<compile_context>
chip_gen: v6e
topology: v6e:2x2x1
jax: 0.10.0
libtpu: 0.0.40
codegen_flags: <defaults>
</compile_context>

<pallas_src>
import math

import jax
import jax.numpy as jnp
from jax import lax
from jax.experimental import pallas as pl
from jax.experimental.pallas import tpu as pltpu


def decoder_kernel(emb_ref, s_ref, enc_ref,
                   wa_s_ref, wa_e_ref, vt_ref,
                   wih_ref, whh_ref, bih_ref, bhh_ref,
                   wfc_ref, bfc_ref,
                   pred_ref, hid_ref):
    f32, bf16 = jnp.float32, jnp.bfloat16

    emb = emb_ref[...]                 # [B, E]       f32
    s = s_ref[...]                     # [B, H]       f32
    enc = enc_ref[...]                 # [L, B, 2He]  f32 (native PyTorch layout)
    H = s.shape[1]

    # ---- Bahdanau attention: tanh(s@Wa_s + enc@Wa_e), score = <., v>, softmax over L ----
    s_proj = jnp.dot(s.astype(bf16), wa_s_ref[...], preferred_element_type=f32)      # [B, H]
    e_proj = lax.dot_general(enc.astype(bf16), wa_e_ref[...],
                             (((2,), (0,)), ((), ())),
                             preferred_element_type=f32)                              # [L, B, H]
    energy = jnp.tanh(e_proj + s_proj[None, :, :])                                    # [L, B, H]

    # score on the MXU (idle at this point): [L,B,H] . [H,1] -> [L,B,1]
    score = lax.dot_general(energy.astype(bf16), vt_ref[...],
                            (((2,), (0,)), ((), ())),
                            preferred_element_type=f32)                               # [L, B, 1]
    m = jnp.max(score, axis=0, keepdims=True)
    p = jnp.exp(score - m)
    a = p / jnp.sum(p, axis=0, keepdims=True)                                         # [L, B, 1]

    # ---- context: c[b, :] = sum_l a[l, b] * enc[l, b, :] ----
    c = jnp.sum(a * enc, axis=0)                                                      # [B, 2He] f32

    # ---- single-step GRU (PyTorch gate order r, z, n); fused x = [emb ; c] vs one W_ih ----
    x_gru = jnp.concatenate([emb, c], axis=1).astype(bf16)                            # [B, E+2He]
    gi = jnp.dot(x_gru, wih_ref[...], preferred_element_type=f32) + bih_ref[...]      # [B, 3H]
    gh = jnp.dot(s.astype(bf16), whh_ref[...], preferred_element_type=f32) + bhh_ref[...]
    r = jax.nn.sigmoid(gi[:, 0 * H:1 * H] + gh[:, 0 * H:1 * H])
    z = jax.nn.sigmoid(gi[:, 1 * H:2 * H] + gh[:, 1 * H:2 * H])
    n = jnp.tanh(gi[:, 2 * H:3 * H] + r * gh[:, 2 * H:3 * H])
    h_new = (1.0 - z) * n + z * s                                                     # [B, H] f32

    # ---- fc_out([h_new ; c ; emb]) against the current lane-dense O-column slab of W_fc ----
    x_fc = jnp.concatenate([h_new, c, emb], axis=1).astype(bf16)                      # [B, H+2He+E]
    pred_ref[...] = (jnp.dot(x_fc, wfc_ref[...], preferred_element_type=f32)
                     + bfc_ref[...])                                                  # [B, TO]

    # Same value every slab step (idempotent) -> correct on a single sequential core and when
    # the slab axis is sharded across TensorCores.
    hid_ref[...] = h_new


def _num_tensorcores():
    # 2 TensorCores per chip on v7x, 1 on v5e/v6e.  String match is only a tiling preference
    # (never a correctness issue); fall back to 1 on anything unknown.
    try:
        kind = jax.devices()[0].device_kind.lower()
        return 2 if ("v7" in kind or "7x" in kind) else 1
    except Exception:
        return 1


def _pick_o_tile(o_pad, num_cores):
    """Largest 128-multiple slab (<= 2048 columns) dividing O_pad; prefer a slab count
    divisible by the TensorCore count so a parallel split balances."""
    best = 128 if o_pad % 128 == 0 else o_pad
    for cand in (128, 256, 512, 1024, 2048):
        if o_pad % cand == 0:
            nj = o_pad // cand
            if num_cores <= 1 or nj % num_cores == 0 or nj < num_cores:
                best = cand
    return best


def _bytes(shape, dtype):
    return math.prod(shape) * jnp.dtype(dtype).itemsize


def decoder_forward(dec_input, s, enc_output_lbf, params, *, o_tile=None):
    """dec_input: [B] int32, s: [B, H], enc_output_lbf: [L, B, 2*He] (native PyTorch layout)."""
    # Embedding gather is JAX glue; dropout = identity (eval mode).
    emb = jnp.take(params["emb_table"], dec_input, axis=0)          # [B, E]

    B, E = emb.shape
    L, _, He2 = enc_output_lbf.shape
    H = s.shape[1]
    K_fc, O = params["w_fc"].shape
    O_pad = ((O + 127) // 128) * 128                                 # lane-dense fc_out output

    # --- one-time weight prep: bf16 cast (halves weight DMA) + attention row split ---
    bf16 = jnp.bfloat16
    wa_s = params["w_attn"][:H, :].astype(bf16)                      # rows multiplying s
    wa_e = params["w_attn"][H:, :].astype(bf16)                      # rows multiplying enc_output
    v_t = jnp.transpose(params["v"]).astype(bf16)                    # [H, 1]
    w_ih = params["w_ih"].astype(bf16)                               # [E+2He, 3H]  (fused)
    w_hh = params["w_hh"].astype(bf16)                               # [H, 3H]
    w_fc = params["w_fc"].astype(bf16)                               # [H+2He+E, O] (fused)
    b_fc = params["b_fc"]
    if O_pad != O:
        w_fc = jnp.pad(w_fc, ((0, 0), (0, O_pad - O)))
        b_fc = jnp.pad(b_fc, ((0, 0), (0, O_pad - O)))

    ncores = _num_tensorcores()
    if o_tile is None:
        o_tile = _pick_o_tile(O_pad, ncores)
    num_j = O_pad // o_tile

    inv2 = lambda j: (0, 0)        # grid-invariant blocks: DMA'd once, kept resident
    inv3 = lambda j: (0, 0, 0)
    slab = lambda j: (0, j)        # vocab-column slabs streamed over the grid

    in_specs = [
        pl.BlockSpec((B, E), inv2),              # embedded
        pl.BlockSpec((B, H), inv2),              # s (previous hidden)
        pl.BlockSpec((L, B, He2), inv3),         # enc_output, native [L, B, 2He]
        pl.BlockSpec((H, H), inv2),              # W_attn rows for s        (bf16)
        pl.BlockSpec((He2, H), inv2),            # W_attn rows for enc      (bf16)
        pl.BlockSpec((H, 1), inv2),              # v^T                      (bf16)
        pl.BlockSpec((E + He2, 3 * H), inv2),    # W_ih (fused rows)        (bf16)
        pl.BlockSpec((H, 3 * H), inv2),          # W_hh                     (bf16)
        pl.BlockSpec((1, 3 * H), inv2),          # b_ih
        pl.BlockSpec((1, 3 * H), inv2),          # b_hh
        pl.BlockSpec((K_fc, o_tile), slab),      # W_fc column slab         (bf16)
        pl.BlockSpec((1, o_tile), slab),         # b_fc column slab
    ]
    out_specs = (pl.BlockSpec((B, o_tile), slab),    # pred slab (lane-dense)
                 pl.BlockSpec((B, H), inv2))         # new hidden state

    # Explicit scoped-VMEM budget: resident block bytes, x2 double-buffering, x2 margin for
    # intermediates, clamped to [16 MiB, 48 MiB] (v7x only has 64 MiB physical).
    blk_bytes = (
        _bytes((B, E), jnp.float32) + _bytes((B, H), jnp.float32)
        + _bytes((L, B, He2), jnp.float32)
        + _bytes((H, H), bf16) + _bytes((He2, H), bf16) + _bytes((H, 1), bf16)
        + _bytes((E + He2, 3 * H), bf16) + _bytes((H, 3 * H), bf16)
        + 2 * _bytes((1, 3 * H), jnp.float32)
        + _bytes((K_fc, o_tile), bf16) + _bytes((1, o_tile), jnp.float32)
        + _bytes((B, o_tile), jnp.float32) + _bytes((B, H), jnp.float32)
    )
    vmem_limit = int(min(max(4 * blk_bytes + (8 << 20), 16 << 20), 48 << 20))

    pred_pad, h_new = pl.pallas_call(
        decoder_kernel,
        out_shape=(jax.ShapeDtypeStruct((B, O_pad), jnp.float32),
                   jax.ShapeDtypeStruct((B, H), jnp.float32)),
        grid=(num_j,),
        in_specs=in_specs,
        out_specs=out_specs,
        compiler_params=pltpu.CompilerParams(
            dimension_semantics=("parallel",),
            vmem_limit_bytes=vmem_limit),
    )(emb, s, enc_output_lbf,
      wa_s, wa_e, v_t,
      w_ih, w_hh, params["b_ih"], params["b_hh"],
      w_fc, b_fc)

    return pred_pad[:, :O], h_new


def reference_forward(dec_input, s, enc_output_lbf, P):
    """Pure-JAX f32 mirror of the PyTorch Decoder.forward (dropout in eval mode)."""
    emb = P["emb_table"][dec_input]                            # [B, E]
    enc = jnp.transpose(enc_output_lbf, (1, 0, 2))             # [B, L, 2He]
    B, L, _ = enc.shape
    H = s.shape[1]
    s_rep = jnp.repeat(s[:, None, :], L, axis=1)
    energy = jnp.tanh(jnp.concatenate([s_rep, enc], axis=2) @ P["w_attn"])
    score = jnp.sum(energy * P["v"][None, :, :], axis=2)
    a = jax.nn.softmax(score, axis=1)
    c = jnp.einsum("bl,bld->bd", a, enc)
    x = jnp.concatenate([emb, c], axis=1)
    gi = x @ P["w_ih"] + P["b_ih"]
    gh = s @ P["w_hh"] + P["b_hh"]
    r = jax.nn.sigmoid(gi[:, :H] + gh[:, :H])
    z = jax.nn.sigmoid(gi[:, H:2 * H] + gh[:, H:2 * H])
    n = jnp.tanh(gi[:, 2 * H:] + r * gh[:, 2 * H:])
    h_new = (1.0 - z) * n + z * s
    pred = jnp.concatenate([h_new, c, emb], axis=1) @ P["w_fc"] + P["b_fc"]
    return pred, h_new


if __name__ == "__main__":
    # Module hyper-params (small, consistent with the forward pass)
    OUTPUT_DIM = 64     # vocab size
    EMB_DIM = 16
    ENC_HID = 32        # -> enc_output feature dim = 64
    DEC_HID = 32
    SRC_LEN = 8
    BATCH = 16

    key = jax.random.PRNGKey(0)
    ks = jax.random.split(key, 12)
    f32 = jnp.float32
    sc = 0.1

    params = {
        "emb_table": sc * jax.random.normal(ks[0], (OUTPUT_DIM, EMB_DIM), f32),
        # attention: Linear(2*He + H -> H, bias=False) with rows ordered [s ; enc];
        # v: Linear(H -> 1, bias=False)
        "w_attn": sc * jax.random.normal(ks[1], (2 * ENC_HID + DEC_HID, DEC_HID), f32),
        "v":      sc * jax.random.normal(ks[2], (1, DEC_HID), f32),
        # GRU(input = emb + 2*He, hidden = H), weights stored transposed (in, 3H)
        "w_ih": sc * jax.random.normal(ks[3], (EMB_DIM + 2 * ENC_HID, 3 * DEC_HID), f32),
        "w_hh": sc * jax.random.normal(ks[4], (DEC_HID, 3 * DEC_HID), f32),
        "b_ih": sc * jax.random.normal(ks[5], (1, 3 * DEC_HID), f32),
        "b_hh": sc * jax.random.normal(ks[6], (1, 3 * DEC_HID), f32),
        # fc_out: Linear(H + 2*He + emb -> output_dim), stored transposed (in, out)
        "w_fc": sc * jax.random.normal(ks[7], (2 * ENC_HID + DEC_HID + EMB_DIM, OUTPUT_DIM), f32),
        "b_fc": sc * jax.random.normal(ks[8], (1, OUTPUT_DIM), f32),
    }

    dec_input = jax.random.randint(ks[9], (BATCH,), 0, OUTPUT_DIM, dtype=jnp.int32)
    s = jax.random.normal(ks[10], (BATCH, DEC_HID), f32)
    enc_output = jax.random.normal(ks[11], (SRC_LEN, BATCH, 2 * ENC_HID), f32)  # PyTorch [L, B, 2He]

    pred, hid = decoder_forward(dec_input, s, enc_output, params)
    jax.block_until_ready((pred, hid))

    pred_ref, hid_ref = reference_forward(dec_input, s, enc_output, params)
    # bf16 MXU operands -> looser tolerance vs. the f32 reference (expected, per review).
    assert jnp.allclose(pred, pred_ref, atol=3e-2, rtol=3e-2), "pred mismatch"
    assert jnp.allclose(hid, hid_ref, atol=3e-2, rtol=3e-2), "hidden mismatch"

    print("KERNEL_OK")
</pallas_src>

<mosaic_0001>
module attributes {stable_mosaic.version = 11 : i64} {
  func.func @decoder_kernel(%arg0: i32, %arg1: memref<16x16xf32, #tpu.memory_space<vmem>>, %arg2: memref<16x32xf32, #tpu.memory_space<vmem>>, %arg3: memref<8x16x64xf32, #tpu.memory_space<vmem>>, %arg4: memref<32x32xbf16, #tpu.memory_space<vmem>>, %arg5: memref<64x32xbf16, #tpu.memory_space<vmem>>, %arg6: memref<32x1xbf16, #tpu.memory_space<vmem>>, %arg7: memref<80x96xbf16, #tpu.memory_space<vmem>>, %arg8: memref<32x96xbf16, #tpu.memory_space<vmem>>, %arg9: memref<1x96xf32, #tpu.memory_space<vmem>>, %arg10: memref<1x96xf32, #tpu.memory_space<vmem>>, %arg11: memref<112x128xbf16, #tpu.memory_space<vmem>>, %arg12: memref<1x128xf32, #tpu.memory_space<vmem>>, %arg13: memref<16x128xf32, #tpu.memory_space<vmem>>, %arg14: memref<16x32xf32, #tpu.memory_space<vmem>>) attributes {dimension_semantics = [#tpu.dimension_semantics<parallel>], iteration_bounds = array<i64: 1>, scalar_prefetch = 0 : i64, scratch_operands = 0 : i64, tpu.core_type = #tpu.core_type<tc>, window_params = [{pipeline_mode = #tpu.pipeline_mode<synchronous>, transform_indices = @transform_0, window_bounds = array<i64: 16, 16>}, {pipeline_mode = #tpu.pipeline_mode<synchronous>, transform_indices = @transform_1, window_bounds = array<i64: 16, 32>}, {pipeline_mode = #tpu.pipeline_mode<synchronous>, transform_indices = @transform_2, window_bounds = array<i64: 8, 16, 64>}, {pipeline_mode = #tpu.pipeline_mode<synchronous>, transform_indices = @transform_3, window_bounds = array<i64: 32, 32>}, {pipeline_mode = #tpu.pipeline_mode<synchronous>, transform_indices = @transform_4, window_bounds = array<i64: 64, 32>}, {pipeline_mode = #tpu.pipeline_mode<synchronous>, transform_indices = @transform_5, window_bounds = array<i64: 32, 1>}, {pipeline_mode = #tpu.pipeline_mode<synchronous>, transform_indices = @transform_6, window_bounds = array<i64: 80, 96>}, {pipeline_mode = #tpu.pipeline_mode<synchronous>, transform_indices = @transform_7, window_bounds = array<i64: 32, 96>}, {pipeline_mode = #tpu.pipeline_mode<synchronous>, transform_indices = @transform_8, window_bounds = array<i64: 1, 96>}, {pipeline_mode = #tpu.pipeline_mode<synchronous>, transform_indices = @transform_9, window_bounds = array<i64: 1, 96>}, {transform_indices = @transform_10, window_bounds = array<i64: 112, 128>}, {transform_indices = @transform_11, window_bounds = array<i64: 1, 128>}, {transform_indices = @transform_12, window_bounds = array<i64: 16, 128>}, {pipeline_mode = #tpu.pipeline_mode<synchronous>, transform_indices = @transform_13, window_bounds = array<i64: 16, 32>}]} {
    %c0 = arith.constant 0 : index
    %c0_0 = arith.constant 0 : index
    %0 = vector.load %arg1[%c0, %c0_0] : memref<16x16xf32, #tpu.memory_space<vmem>>, vector<16x16xf32>
    %c0_1 = arith.constant 0 : index
    %c0_2 = arith.constant 0 : index
    %1 = vector.load %arg2[%c0_1, %c0_2] : memref<16x32xf32, #tpu.memory_space<vmem>>, vector<16x32xf32>
    %c0_3 = arith.constant 0 : index
    %c0_4 = arith.constant 0 : index
    %c0_5 = arith.constant 0 : index
    %2 = vector.load %arg3[%c0_3, %c0_4, %c0_5] : memref<8x16x64xf32, #tpu.memory_space<vmem>>, vector<8x16x64xf32>
    %3 = arith.truncf %1 : vector<16x32xf32> to vector<16x32xbf16>
    %c0_6 = arith.constant 0 : index
    %c0_7 = arith.constant 0 : index
    %4 = vector.load %arg4[%c0_6, %c0_7] : memref<32x32xbf16, #tpu.memory_space<vmem>>, vector<32x32xbf16>
    %cst = arith.constant dense<0.000000e+00> : vector<16x32xf32>
    %5 = tpu.matmul %3, %4, %cst {dimension_numbers = #tpu.dot_dimension_numbers<[1], [0], [0], [1], [0, 0, 1, 1], [], []>} : vector<16x32xbf16>, vector<32x32xbf16>, vector<16x32xf32> -> vector<16x32xf32>
    %6 = arith.truncf %2 : vector<8x16x64xf32> to vector<8x16x64xbf16>
    %c0_8 = arith.constant 0 : index
    %c0_9 = arith.constant 0 : index
    %7 = vector.load %arg5[%c0_8, %c0_9] : memref<64x32xbf16, #tpu.memory_space<vmem>>, vector<64x32xbf16>
    %cst_10 = arith.constant dense<0.000000e+00> : vector<8x16x32xf32>
    %8 = tpu.matmul %6, %7, %cst_10 {dimension_numbers = #tpu.dot_dimension_numbers<[2], [0], [0, 1], [1], [0, 0, 0, 1, 1, 1], [], []>} : vector<8x16x64xbf16>, vector<64x32xbf16>, vector<8x16x32xf32> -> vector<8x16x32xf32>
    %9 = vector.shape_cast %5 : vector<16x32xf32> to vector<1x16x32xf32>
    %10 = vector.broadcast %9 : vector<1x16x32xf32> to vector<8x16x32xf32>
    %11 = arith.addf %8, %10 : vector<8x16x32xf32>
    %12 = math.tanh %11 : vector<8x16x32xf32>
    %13 = arith.truncf %12 : vector<8x16x32xf32> to vector<8x16x32xbf16>
    %c0_11 = arith.constant 0 : index
    %c0_12 = arith.constant 0 : index
    %14 = vector.load %arg6[%c0_11, %c0_12] : memref<32x1xbf16, #tpu.memory_space<vmem>>, vector<32x1xbf16>
    %cst_13 = arith.constant dense<0.000000e+00> : vector<8x16x1xf32>
    %15 = tpu.matmul %13, %14, %cst_13 {dimension_numbers = #tpu.dot_dimension_numbers<[2], [0], [0, 1], [1], [0, 0, 0, 1, 1, 1], [], []>} : vector<8x16x32xbf16>, vector<32x1xbf16>, vector<8x16x1xf32> -> vector<8x16x1xf32>
    %cst_14 = arith.constant dense<0xFF800000> : vector<16x1xf32>
    %16 = vector.multi_reduction <maximumf>, %15, %cst_14 [0] : vector<8x16x1xf32> to vector<16x1xf32>
    %17 = vector.shape_cast %16 : vector<16x1xf32> to vector<1x16x1xf32>
    %18 = vector.broadcast %17 : vector<1x16x1xf32> to vector<8x16x1xf32>
    %19 = arith.subf %15, %18 : vector<8x16x1xf32>
    %20 = math.exp %19 : vector<8x16x1xf32>
    %cst_15 = arith.constant dense<0.000000e+00> : vector<16x1xf32>
    %21 = vector.multi_reduction <add>, %20, %cst_15 [0] : vector<8x16x1xf32> to vector<16x1xf32>
    %22 = vector.shape_cast %21 : vector<16x1xf32> to vector<1x16x1xf32>
    %23 = vector.broadcast %22 : vector<1x16x1xf32> to vector<8x16x1xf32>
    %24 = arith.divf %20, %23 : vector<8x16x1xf32>
    %25 = vector.broadcast %24 : vector<8x16x1xf32> to vector<8x16x64xf32>
    %26 = arith.mulf %25, %2 : vector<8x16x64xf32>
    %cst_16 = arith.constant dense<0.000000e+00> : vector<16x64xf32>
    %27 = vector.multi_reduction <add>, %26, %cst_16 [0] : vector<8x16x64xf32> to vector<16x64xf32>
    %28 = tpu.concatenate %0, %27 in 1 : vector<16x16xf32>, vector<16x64xf32> -> vector<16x80xf32>
    %29 = arith.truncf %28 : vector<16x80xf32> to vector<16x80xbf16>
    %c0_17 = arith.constant 0 : index
    %c0_18 = arith.constant 0 : index
    %30 = vector.load %arg7[%c0_17, %c0_18] : memref<80x96xbf16, #tpu.memory_space<vmem>>, vector<80x96xbf16>
    %cst_19 = arith.constant dense<0.000000e+00> : vector<16x96xf32>
    %31 = tpu.matmul %29, %30, %cst_19 {dimension_numbers = #tpu.dot_dimension_numbers<[1], [0], [0], [1], [0, 0, 1, 1], [], []>} : vector<16x80xbf16>, vector<80x96xbf16>, vector<16x96xf32> -> vector<16x96xf32>
    %c0_20 = arith.constant 0 : index
    %c0_21 = arith.constant 0 : index
    %32 = vector.load %arg9[%c0_20, %c0_21] : memref<1x96xf32, #tpu.memory_space<vmem>>, vector<1x96xf32>
    %33 = vector.broadcast %32 : vector<1x96xf32> to vector<16x96xf32>
    %34 = arith.addf %31, %33 : vector<16x96xf32>
    %35 = arith.truncf %1 : vector<16x32xf32> to vector<16x32xbf16>
    %c0_22 = arith.constant 0 : index
    %c0_23 = arith.constant 0 : index
    %36 = vector.load %arg8[%c0_22, %c0_23] : memref<32x96xbf16, #tpu.memory_space<vmem>>, vector<32x96xbf16>
    %cst_24 = arith.constant dense<0.000000e+00> : vector<16x96xf32>
    %37 = tpu.matmul %35, %36, %cst_24 {dimension_numbers = #tpu.dot_dimension_numbers<[1], [0], [0], [1], [0, 0, 1, 1], [], []>} : vector<16x32xbf16>, vector<32x96xbf16>, vector<16x96xf32> -> vector<16x96xf32>
    %c0_25 = arith.constant 0 : index
    %c0_26 = arith.constant 0 : index
    %38 = vector.load %arg10[%c0_25, %c0_26] : memref<1x96xf32, #tpu.memory_space<vmem>>, vector<1x96xf32>
    %39 = vector.broadcast %38 : vector<1x96xf32> to vector<16x96xf32>
    %40 = arith.addf %37, %39 : vector<16x96xf32>
    %41 = vector.extract_strided_slice %34 {offsets = [0, 0], sizes = [16, 32], strides = [1, 1]} : vector<16x96xf32> to vector<16x32xf32>
    %42 = vector.extract_strided_slice %40 {offsets = [0, 0], sizes = [16, 32], strides = [1, 1]} : vector<16x96xf32> to vector<16x32xf32>
    %43 = arith.addf %41, %42 : vector<16x32xf32>
    %44 = arith.negf %43 : vector<16x32xf32>
    %45 = math.exp %44 : vector<16x32xf32>
    %cst_27 = arith.constant 1.000000e+00 : f32
    %46 = vector.broadcast %cst_27 : f32 to vector<16x32xf32>
    %47 = arith.addf %46, %45 : vector<16x32xf32>
    %48 = arith.divf %46, %47 : vector<16x32xf32>
    %49 = vector.extract_strided_slice %34 {offsets = [0, 32], sizes = [16, 32], strides = [1, 1]} : vector<16x96xf32> to vector<16x32xf32>
    %50 = vector.extract_strided_slice %40 {offsets = [0, 32], sizes = [16, 32], strides = [1, 1]} : vector<16x96xf32> to vector<16x32xf32>
    %51 = arith.addf %49, %50 : vector<16x32xf32>
    %52 = arith.negf %51 : vector<16x32xf32>
    %53 = math.exp %52 : vector<16x32xf32>
    %cst_28 = arith.constant 1.000000e+00 : f32
    %54 = vector.broadcast %cst_28 : f32 to vector<16x32xf32>
    %55 = arith.addf %54, %53 : vector<16x32xf32>
    %56 = arith.divf %54, %55 : vector<16x32xf32>
    %57 = vector.extract_strided_slice %34 {offsets = [0, 64], sizes = [16, 32], strides = [1, 1]} : vector<16x96xf32> to vector<16x32xf32>
    %58 = vector.extract_strided_slice %40 {offsets = [0, 64], sizes = [16, 32], strides = [1, 1]} : vector<16x96xf32> to vector<16x32xf32>
    %59 = arith.mulf %48, %58 : vector<16x32xf32>
    %60 = arith.addf %57, %59 : vector<16x32xf32>
    %61 = math.tanh %60 : vector<16x32xf32>
    %cst_29 = arith.constant 1.000000e+00 : f32
    %62 = vector.broadcast %cst_29 : f32 to vector<16x32xf32>
    %63 = arith.subf %62, %56 : vector<16x32xf32>
    %64 = arith.mulf %63, %61 : vector<16x32xf32>
    %65 = arith.mulf %56, %1 : vector<16x32xf32>
    %66 = arith.addf %64, %65 : vector<16x32xf32>
    %67 = tpu.concatenate %66, %27, %0 in 1 : vector<16x32xf32>, vector<16x64xf32>, vector<16x16xf32> -> vector<16x112xf32>
    %68 = arith.truncf %67 : vector<16x112xf32> to vector<16x112xbf16>
    %c0_30 = arith.constant 0 : index
    %c0_31 = arith.constant 0 : index
    %69 = vector.load %arg11[%c0_30, %c0_31] : memref<112x128xbf16, #tpu.memory_space<vmem>>, vector<112x128xbf16>
    %cst_32 = arith.constant dense<0.000000e+00> : vector<16x128xf32>
    %70 = tpu.matmul %68, %69, %cst_32 {dimension_numbers = #tpu.dot_dimension_numbers<[1], [0], [0], [1], [0, 0, 1, 1], [], []>} : vector<16x112xbf16>, vector<112x128xbf16>, vector<16x128xf32> -> vector<16x128xf32>
    %c0_33 = arith.constant 0 : index
    %c0_34 = arith.constant 0 : index
    %71 = vector.load %arg12[%c0_33, %c0_34] : memref<1x128xf32, #tpu.memory_space<vmem>>, vector<1x128xf32>
    %72 = vector.broadcast %71 : vector<1x128xf32> to vector<16x128xf32>
    %73 = arith.addf %70, %72 : vector<16x128xf32>
    %c0_35 = arith.constant 0 : index
    %c0_36 = arith.constant 0 : index
    %74 = vector.load %arg13[%c0_35, %c0_36] : memref<16x128xf32, #tpu.memory_space<vmem>>, vector<16x128xf32>
    tpu.vector_store %arg13[%c0_35, %c0_36], %73 {strides = array<i32>} : memref<16x128xf32, #tpu.memory_space<vmem>>, vector<16x128xf32>,
    %c0_37 = arith.constant 0 : index
    %c0_38 = arith.constant 0 : index
    %75 = vector.load %arg14[%c0_37, %c0_38] : memref<16x32xf32, #tpu.memory_space<vmem>>, vector<16x32xf32>
    tpu.vector_store %arg14[%c0_37, %c0_38], %66 {strides = array<i32>} : memref<16x32xf32, #tpu.memory_space<vmem>>, vector<16x32xf32>,
    return
  }
  func.func @transform_0(%arg0: i32) -> (i32, i32) {
    %c0_i32 = arith.constant 0 : i32
    %c0_i32_0 = arith.constant 0 : i32
    %c0_i32_1 = arith.constant 0 : i32
    return %c0_i32, %c0_i32_0 : i32, i32
  }
  func.func @transform_1(%arg0: i32) -> (i32, i32) {
    %c0_i32 = arith.constant 0 : i32
    %c0_i32_0 = arith.constant 0 : i32
    %c0_i32_1 = arith.constant 0 : i32
    return %c0_i32, %c0_i32_0 : i32, i32
  }
  func.func @transform_2(%arg0: i32) -> (i32, i32, i32) {
    %c0_i32 = arith.constant 0 : i32
    %c0_i32_0 = arith.constant 0 : i32
    %c0_i32_1 = arith.constant 0 : i32
    %c0_i32_2 = arith.constant 0 : i32
    return %c0_i32, %c0_i32_0, %c0_i32_1 : i32, i32, i32
  }
  func.func @transform_3(%arg0: i32) -> (i32, i32) {
    %c0_i32 = arith.constant 0 : i32
    %c0_i32_0 = arith.constant 0 : i32
    %c0_i32_1 = arith.constant 0 : i32
    return %c0_i32, %c0_i32_0 : i32, i32
  }
  func.func @transform_4(%arg0: i32) -> (i32, i32) {
    %c0_i32 = arith.constant 0 : i32
    %c0_i32_0 = arith.constant 0 : i32
    %c0_i32_1 = arith.constant 0 : i32
    return %c0_i32, %c0_i32_0 : i32, i32
  }
  func.func @transform_5(%arg0: i32) -> (i32, i32) {
    %c0_i32 = arith.constant 0 : i32
    %c0_i32_0 = arith.constant 0 : i32
    %c0_i32_1 = arith.constant 0 : i32
    return %c0_i32, %c0_i32_0 : i32, i32
  }
  func.func @transform_6(%arg0: i32) -> (i32, i32) {
    %c0_i32 = arith.constant 0 : i32
    %c0_i32_0 = arith.constant 0 : i32
    %c0_i32_1 = arith.constant 0 : i32
    return %c0_i32, %c0_i32_0 : i32, i32
  }
  func.func @transform_7(%arg0: i32) -> (i32, i32) {
    %c0_i32 = arith.constant 0 : i32
    %c0_i32_0 = arith.constant 0 : i32
    %c0_i32_1 = arith.constant 0 : i32
    return %c0_i32, %c0_i32_0 : i32, i32
  }
  func.func @transform_8(%arg0: i32) -> (i32, i32) {
    %c0_i32 = arith.constant 0 : i32
    %c0_i32_0 = arith.constant 0 : i32
    %c0_i32_1 = arith.constant 0 : i32
    return %c0_i32, %c0_i32_0 : i32, i32
  }
  func.func @transform_9(%arg0: i32) -> (i32, i32) {
    %c0_i32 = arith.constant 0 : i32
    %c0_i32_0 = arith.constant 0 : i32
    %c0_i32_1 = arith.constant 0 : i32
    return %c0_i32, %c0_i32_0 : i32, i32
  }
  func.func @transform_10(%arg0: i32) -> (i32, i32) {
    %c0_i32 = arith.constant 0 : i32
    %c0_i32_0 = arith.constant 0 : i32
    return %c0_i32, %arg0 : i32, i32
  }
  func.func @transform_11(%arg0: i32) -> (i32, i32) {
    %c0_i32 = arith.constant 0 : i32
    %c0_i32_0 = arith.constant 0 : i32
    return %c0_i32, %arg0 : i32, i32
  }
  func.func @transform_12(%arg0: i32) -> (i32, i32) {
    %c0_i32 = arith.constant 0 : i32
    %c0_i32_0 = arith.constant 0 : i32
    return %c0_i32, %arg0 : i32, i32
  }
  func.func @transform_13(%arg0: i32) -> (i32, i32) {
    %c0_i32 = arith.constant 0 : i32
    %c0_i32_0 = arith.constant 0 : i32
    %c0_i32_1 = arith.constant 0 : i32
    return %c0_i32, %c0_i32_0 : i32, i32
  }
}

</mosaic_0001>

<llo_original>
// kernel: tpu_custom_call.1
$region0: #{tpu_custom_call.1}
  #allocation0 [shape = 'u32[]', space=smem, size = 0x4, offset = 0x4, fixed_abs, tag = 'smem constant byte address 0x4 - core index']
  #allocation1 [shape = 'u32[144,128]{1,0:T(1,128)}', space=vmem, size = 0x12000, scoped, tag = 'internal scratch']
  %s0 = inlined_call_operand.vmem [shape: f32[16,16], index: 0, kind: input, shape index: {}]
  %s1 = inlined_call_operand.hbm [shape: f32[16,32], index: 1, kind: input, shape index: {}]
  %s2 = inlined_call_operand.hbm [shape: f32[8,16,64], index: 2, kind: input, shape index: {}]
  %s3 = inlined_call_operand.hbm [shape: bf16[32,32], index: 3, kind: input, shape index: {}]
  %s4 = inlined_call_operand.vmem [shape: bf16[64,32], index: 4, kind: input, shape index: {}]
  %s5 = inlined_call_operand.vmem [shape: bf16[32,1], index: 5, kind: input, shape index: {}]
  %s6 = inlined_call_operand.hbm [shape: bf16[80,96], index: 6, kind: input, shape index: {}]
  %s7 = inlined_call_operand.hbm [shape: bf16[32,96], index: 7, kind: input, shape index: {}]
  %s8 = inlined_call_operand.vmem [shape: f32[1,96], index: 8, kind: input, shape index: {}]
  %s9 = inlined_call_operand.vmem [shape: f32[1,96], index: 9, kind: input, shape index: {}]
  %s10 = inlined_call_operand.vmem [shape: bf16[112,128], index: 10, kind: input, shape index: {}]
  %s11 = inlined_call_operand.vmem [shape: f32[1,128], index: 11, kind: input, shape index: {}]
  %s12 = inlined_call_operand.hbm [shape: f32[16,128], index: 12, kind: output, shape index: {0}]
  %s13 = inlined_call_operand.hbm [shape: f32[16,32], index: 13, kind: output, shape index: {1}]
  %14 = xla_tuple %s12, %s13
  %s15 = sld [smem:[#allocation0]]
  $region86: #{tpu_custom_call.1} parent=0
    _
  %s17 = ssub.s32 1, %s15
  %s18 = scalar_select 0, %s17, %s15
  $region1: #{tpu_custom_call.1} parent=0
    #allocation2 [shape = 'u8[8192]{0}', space=vmem, size = 0x2000, scoped, tag = 'input window, operand 1, single buffered']
    #allocation3 [shape = 's32[1]{0}', space=sflag, size = 0x4, scoped, tag = 'scoped memory for tpu_custom_call.1']
    #allocation4 [shape = 's32[1]{0}', space=sflag, size = 0x4, scoped, tag = 'scoped memory for tpu_custom_call.1']
    #allocation5 [shape = 'u8[65536]{0}', space=vmem, size = 0x10000, scoped, tag = 'input window, operand 2, single buffered']
    #allocation6 [shape = 's32[1]{0}', space=sflag, size = 0x4, scoped, tag = 'scoped memory for tpu_custom_call.1']
    #allocation7 [shape = 'u8[8192]{0}', space=vmem, size = 0x2000, scoped, tag = 'input window, operand 3, single buffered']
    #allocation8 [shape = 'u8[20480]{0}', space=vmem, size = 0x5000, scoped, tag = 'input window, operand 6, single buffered']
    #allocation9 [shape = 's32[1]{0}', space=sflag, size = 0x4, scoped, tag = 'scoped memory for tpu_custom_call.1']
    #allocation10 [shape = 'u8[8192]{0}', space=vmem, size = 0x2000, scoped, tag = 'input window, operand 7, single buffered']
    #allocation11 [shape = 'u8[8192]{0}', space=vmem, size = 0x2000, scoped, tag = 'output window, operand 0, single buffered']
    #allocation12 [shape = 'u8[8192]{0}', space=vmem, size = 0x2000, scoped, tag = 'output window, operand 1, single buffered']
    #allocation13 [shape = 's32[1]{0}', space=sflag, size = 0x4, scoped, tag = 'scoped memory for tpu_custom_call.1']
    %19 = vsyncpa [#allocation3], 0
    %20 = vsyncpa [#allocation6], 0
    %21 = vsyncpa [#allocation9], 0
    %22 = vsyncpa [#allocation4], 0
    %23 = vsyncpa [#allocation13], 0
    // Predicated region
    $region2: #{tpu_custom_call.1} parent=1 // pred_check
      _
    $region3: #{tpu_custom_call.1} parent=1 // pred_check_branch
      %25 = sbr.rel (0) target = $region5
    $region4: #{tpu_custom_call.1} parent=1 // pred_region
      _
    $region5: #{tpu_custom_call.1} parent=1 // pred_fallthru
      _
    // Predicated region
    $region6: #{tpu_custom_call.1} parent=1 // pred_check
      _
    $region7: #{tpu_custom_call.1} parent=1 // pred_check_branch
      %27 = sbr.rel (0) target = $region9
    $region8: #{tpu_custom_call.1} parent=1 // pred_region
      %s29 = ssub.s32 256, 256
      %30 = vsyncadd [#allocation3], %s29
      %s31 = sshll.u32 [#allocation2], 4
      %s32 = int_to_ptr.vmem [resolvable:$true] %s31
      %37 = dma.hbm_to_vmem [thread:$0]  %s1, 256, %s32, [#allocation3], 128, 128, 8
    $region9: #{tpu_custom_call.1} parent=1 // pred_fallthru
      _
    // Predicated region
    $region10: #{tpu_custom_call.1} parent=1 // pred_check
      _
    $region11: #{tpu_custom_call.1} parent=1 // pred_check_branch
      %39 = sbr.rel (0) target = $region13
    $region12: #{tpu_custom_call.1} parent=1 // pred_region
      %s41 = ssub.s32 2048, 2048
      %42 = vsyncadd [#allocation6], %s41
      %s43 = sshll.u32 [#allocation5], 4
      %s44 = int_to_ptr.vmem [resolvable:$true] %s43
      %49 = dma.hbm_to_vmem [thread:$0]  %s2, 2048, %s44, [#allocation6], 128, 128, 8
    $region13: #{tpu_custom_call.1} parent=1 // pred_fallthru
      _
    // Predicated region
    $region14: #{tpu_custom_call.1} parent=1 // pred_check
      _
    $region15: #{tpu_custom_call.1} parent=1 // pred_check_branch
      %51 = sbr.rel (0) target = $region17
    $region16: #{tpu_custom_call.1} parent=1 // pred_region
      %s53 = ssub.s32 256, 256
      %54 = vsyncadd [#allocation6], %s53
      %s55 = sshll.u32 [#allocation7], 4
      %s56 = int_to_ptr.vmem [resolvable:$true] %s55
      %61 = dma.hbm_to_vmem [thread:$0]  %s3, 256, %s56, [#allocation6], 64, 64, 4
    $region17: #{tpu_custom_call.1} parent=1 // pred_fallthru
      _
    // Predicated region
    $region18: #{tpu_custom_call.1} parent=1 // pred_check
      _
    $region19: #{tpu_custom_call.1} parent=1 // pred_check_branch
      %63 = sbr.rel (0) target = $region21
    $region20: #{tpu_custom_call.1} parent=1 // pred_region
      _
    $region21: #{tpu_custom_call.1} parent=1 // pred_fallthru
      _
    // Predicated region
    $region22: #{tpu_custom_call.1} parent=1 // pred_check
      _
    $region23: #{tpu_custom_call.1} parent=1 // pred_check_branch
      %65 = sbr.rel (0) target = $region25
    $region24: #{tpu_custom_call.1} parent=1 // pred_region
      _
    $region25: #{tpu_custom_call.1} parent=1 // pred_fallthru
      _
    // Predicated region
    $region26: #{tpu_custom_call.1} parent=1 // pred_check
      _
    $region27: #{tpu_custom_call.1} parent=1 // pred_check_branch
      %67 = sbr.rel (0) target = $region29
    $region28: #{tpu_custom_call.1} parent=1 // pred_region
      %s69 = ssub.s32 640, 640
      %70 = vsyncadd [#allocation9], %s69
      %s71 = sshll.u32 [#allocation8], 4
      %s72 = int_to_ptr.vmem [resolvable:$true] %s71
      %77 = dma.hbm_to_vmem [thread:$0]  %s6, 640, %s72, [#allocation9], 64, 64, 4
    $region29: #{tpu_custom_call.1} parent=1 // pred_fallthru
      _
    // Predicated region
    $region30: #{tpu_custom_call.1} parent=1 // pred_check
      _
    $region31: #{tpu_custom_call.1} parent=1 // pred_check_branch
      %79 = sbr.rel (0) target = $region33
    $region32: #{tpu_custom_call.1} parent=1 // pred_region
      %s81 = ssub.s32 256, 256
      %82 = vsyncadd [#allocation9], %s81
      %s83 = sshll.u32 [#allocation10], 4
      %s84 = int_to_ptr.vmem [resolvable:$true] %s83
      %89 = dma.hbm_to_vmem [thread:$0]  %s7, 256, %s84, [#allocation9], 64, 64, 4
    $region33: #{tpu_custom_call.1} parent=1 // pred_fallthru
      _
    // Predicated region
    $region34: #{tpu_custom_call.1} parent=1 // pred_check
      _
    $region35: #{tpu_custom_call.1} parent=1 // pred_check_branch
      %91 = sbr.rel (0) target = $region37
    $region36: #{tpu_custom_call.1} parent=1 // pred_region
      _
    $region37: #{tpu_custom_call.1} parent=1 // pred_fallthru
      _
    // Predicated region
    $region38: #{tpu_custom_call.1} parent=1 // pred_check
      _
    $region39: #{tpu_custom_call.1} parent=1 // pred_check_branch
      %93 = sbr.rel (0) target = $region41
    $region40: #{tpu_custom_call.1} parent=1 // pred_region
      _
    $region41: #{tpu_custom_call.1} parent=1 // pred_fallthru
      _
    // Predicated region
    $region42: #{tpu_custom_call.1} parent=1 // pred_check
      _
    $region43: #{tpu_custom_call.1} parent=1 // pred_check_branch
      %95 = sbr.rel (0) target = $region45
    $region44: #{tpu_custom_call.1} parent=1 // pred_region
      _
    $region45: #{tpu_custom_call.1} parent=1 // pred_fallthru
      _
    // Predicated region
    $region46: #{tpu_custom_call.1} parent=1 // pred_check
      _
    $region47: #{tpu_custom_call.1} parent=1 // pred_check_branch
      %97 = sbr.rel (0) target = $region49
    $region48: #{tpu_custom_call.1} parent=1 // pred_region
      _
    $region49: #{tpu_custom_call.1} parent=1 // pred_fallthru
      _
    // Predicated region
    $region50: #{tpu_custom_call.1} parent=1 // pred_check
      _
    $region51: #{tpu_custom_call.1} parent=1 // pred_check_branch
      %99 = sbr.rel (0) target = $region53
    $region52: #{tpu_custom_call.1} parent=1 // pred_region
      %100 = dma.done [#allocation3], 256
    $region53: #{tpu_custom_call.1} parent=1 // pred_fallthru
      _
    // Predicated region
    $region54: #{tpu_custom_call.1} parent=1 // pred_check
      _
    $region55: #{tpu_custom_call.1} parent=1 // pred_check_branch
      %102 = sbr.rel (0) target = $region57
    $region56: #{tpu_custom_call.1} parent=1 // pred_region
      %103 = dma.done [#allocation6], 2048
    $region57: #{tpu_custom_call.1} parent=1 // pred_fallthru
      _
    // Predicated region
    $region58: #{tpu_custom_call.1} parent=1 // pred_check
      _
    $region59: #{tpu_custom_call.1} parent=1 // pred_check_branch
      %105 = sbr.rel (0) target = $region61
    $region60: #{tpu_custom_call.1} parent=1 // pred_region
      %106 = dma.done [#allocation6], 256
    $region61: #{tpu_custom_call.1} parent=1 // pred_fallthru
      _
    // Predicated region
    $region62: #{tpu_custom_call.1} parent=1 // pred_check
      _
    $region63: #{tpu_custom_call.1} parent=1 // pred_check_branch
      %108 = sbr.rel (0) target = $region65
    $region64: #{tpu_custom_call.1} parent=1 // pred_region
      %109 = dma.done [#allocation9], 640
    $region65: #{tpu_custom_call.1} parent=1 // pred_fallthru
      _
    // Predicated region
    $region66: #{tpu_custom_call.1} parent=1 // pred_check
      _
    $region67: #{tpu_custom_call.1} parent=1 // pred_check_branch
      %111 = sbr.rel (0) target = $region69
    $region68: #{tpu_custom_call.1} parent=1 // pred_region
      %112 = dma.done [#allocation9], 256
    $region69: #{tpu_custom_call.1} parent=1 // pred_fallthru
      _
    %v114 = vld [vmem:[%s0] sm:$0xff]
    %v115 = vld [vmem:[%s0 + $0x8] sm:$0xff]
    %v116 = vld [vmem:[#allocation2] sm:$0xff]
    %v117 = vld [vmem:[#allocation2 + $0x8] sm:$0xff]
    %v118 = vld [vmem:[#allocation5] sm:$0xff]
    %v119 = vld [vmem:[#allocation5 + $0x8] sm:$0xff]
    %v120 = vld [vmem:[#allocation5 + $0x10] sm:$0xff]
    %v121 = vld [vmem:[#allocation5 + $0x18] sm:$0xff]
    %v122 = vld [vmem:[#allocation5 + $0x20] sm:$0xff]
    %v123 = vld [vmem:[#allocation5 + $0x28] sm:$0xff]
    %v124 = vld [vmem:[#allocation5 + $0x30] sm:$0xff]
    %v125 = vld [vmem:[#allocation5 + $0x38] sm:$0xff]
    %v126 = vld [vmem:[#allocation5 + $0x40] sm:$0xff]
    %v127 = vld [vmem:[#allocation5 + $0x48] sm:$0xff]
    %v128 = vld [vmem:[#allocation5 + $0x50] sm:$0xff]
    %v129 = vld [vmem:[#allocation5 + $0x58] sm:$0xff]
    %v130 = vld [vmem:[#allocation5 + $0x60] sm:$0xff]
    %v131 = vld [vmem:[#allocation5 + $0x68] sm:$0xff]
    %v132 = vld [vmem:[#allocation5 + $0x70] sm:$0xff]
    %v133 = vld [vmem:[#allocation5 + $0x78] sm:$0xff]
    %v134 = vpack.c.bf16 %v117, %v116
    %v135 = vld [vmem:[#allocation7] sm:$0xf]
    %v136 = vld [vmem:[#allocation7 + $0x4] sm:$0xf]
    %v137 = vld [vmem:[#allocation7 + $0x8] sm:$0xf]
    %v138 = vld [vmem:[#allocation7 + $0xc] sm:$0xf]
    %v143 = vunpack.c.l.b16 %v135
    %v144 = vunpack.c.l.b16 %v136
    %v145 = vunpack.c.l.b16 %v137
    %v146 = vunpack.c.l.b16 %v138
    %v147 = vpack.c.b16 %v144, %v143
    %v148 = vpack.c.b16 %v146, %v145
    %vm151 = vcmask 261120
    %v153 = vsel %vm151, %v134, 0
    %155 = vmatprep.subr.bf16.mxu0 0
    %156 = vmatpush1.bf16.msra.mxu0 0
    %157 = vmatprep.subr.bf16.mxu0 0
    %158 = vmatpush1.bf16.msra.mxu0 0
    %159 = vmatprep.subr.bf16.mxu0 0
    %160 = vmatpush1.bf16.msra.mxu0 0
    %161 = vmatprep.subr.bf16.mxu0 0
    %162 = vmatpush1.bf16.msra.mxu0 0
    %163 = vmatprep.subr.bf16.mxu0 0
    %164 = vmatpush1.bf16.msra.mxu0 0
    %165 = vmatprep.subr.bf16.mxu0 0
    %166 = vmatpush1.bf16.msra.mxu0 0
    %167 = vmatprep.subr.bf16.mxu0 0
    %168 = vmatpush1.bf16.msra.mxu0 %v148
    %169 = vmatprep.subr.bf16.mxu0 0
    %170 = vmatpush1.bf16.msra.mxu0 %v147
    %171 = vmatprep.subr.bf16.mxu0 0
    %172 = vmatpush2.bf16.msra.mxu0 0
    %173 = vmatprep.subr.bf16.mxu0 0
    %174 = vmatpush2.bf16.msra.mxu0 0
    %175 = vmatprep.subr.bf16.mxu0 0
    %176 = vmatpush2.bf16.msra.mxu0 0
    %177 = vmatprep.subr.bf16.mxu0 0
    %178 = vmatpush2.bf16.msra.mxu0 0
    %179 = vmatprep.subr.bf16.mxu0 0
    %180 = vmatpush2.bf16.msra.mxu0 0
    %181 = vmatprep.subr.bf16.mxu0 0
    %182 = vmatpush2.bf16.msra.mxu0 0
    %183 = vmatprep.subr.bf16.mxu0 0
    %184 = vmatpush2.bf16.msra.mxu0 0
    %185 = vmatprep.subr.bf16.mxu0 0
    %186 = vmatpush2.bf16.msra.mxu0 0
    %187 = vmatprep.mubr.bf16.mxu0 0
    %188 = vmatmul.mubr.bf16.gmra.mxu0 %v153
    %v189 = vpop.f32.mrf.mxu0
    %v190 = vadd.f32 0.0, %v189
    %v191 = vpop.f32.mrf.mxu0
    %v192 = vpop.f32.mrf.mxu0
    %v193 = vadd.f32 0.0, %v192
    %v194 = vpop.f32.mrf.mxu0
    %195 = vdwg.mxu0
    %v196 = vpack.c.bf16 %v119, %v118
    %v197 = vpack.c.bf16 %v121, %v120
    %v198 = vpack.c.bf16 %v123, %v122
    %v199 = vpack.c.bf16 %v125, %v124
    %v200 = vpack.c.bf16 %v127, %v126
    %v201 = vpack.c.bf16 %v129, %v128
    %v202 = vpack.c.bf16 %v131, %v130
    %v203 = vpack.c.bf16 %v133, %v132
    %v204 = vld [vmem:[%s4] sm:$0xf]
    %v205 = vld [vmem:[%s4 + $0x4] sm:$0xf]
    %v206 = vld [vmem:[%s4 + $0x8] sm:$0xf]
    %v207 = vld [vmem:[%s4 + $0xc] sm:$0xf]
    %v208 = vld [vmem:[%s4 + $0x10] sm:$0xf]
    %v209 = vld [vmem:[%s4 + $0x14] sm:$0xf]
    %v210 = vld [vmem:[%s4 + $0x18] sm:$0xf]
    %v211 = vld [vmem:[%s4 + $0x1c] sm:$0xf]
    %v220 = vunpack.c.l.b16 %v204
    %v221 = vunpack.c.l.b16 %v205
    %v222 = vunpack.c.l.b16 %v206
    %v223 = vunpack.c.l.b16 %v207
    %v224 = vunpack.c.l.b16 %v208
    %v225 = vunpack.c.l.b16 %v209
    %v226 = vunpack.c.l.b16 %v210
    %v227 = vunpack.c.l.b16 %v211
    %v228 = vpack.c.b16 %v221, %v220
    %v229 = vpack.c.b16 %v223, %v222
    %v230 = vpack.c.b16 %v225, %v224
    %v231 = vpack.c.b16 %v227, %v226
    %vm236 = vcmask 523264
    %v238 = vsel %vm236, %v196, 0
    %v241 = vsel %vm236, %v197, 0
    %v244 = vsel %vm236, %v198, 0
    %v247 = vsel %vm236, %v199, 0
    %v250 = vsel %vm236, %v200, 0
    %v253 = vsel %vm236, %v201, 0
    %v256 = vsel %vm236, %v202, 0
    %v259 = vsel %vm236, %v203, 0
    %261 = vmatprep.subr.bf16.mxu0 0
    %262 = vmatpush1.bf16.msra.mxu0 0
    %263 = vmatprep.subr.bf16.mxu0 0
    %264 = vmatpush1.bf16.msra.mxu0 0
    %265 = vmatprep.subr.bf16.mxu0 0
    %266 = vmatpush1.bf16.msra.mxu0 0
    %267 = vmatprep.subr.bf16.mxu0 0
    %268 = vmatpush1.bf16.msra.mxu0 0
    %269 = vmatprep.subr.bf16.mxu0 0
    %270 = vmatpush1.bf16.msra.mxu0 %v231
    %271 = vmatprep.subr.bf16.mxu0 0
    %272 = vmatpush1.bf16.msra.mxu0 %v230
    %273 = vmatprep.subr.bf16.mxu0 0
    %274 = vmatpush1.bf16.msra.mxu0 %v229
    %275 = vmatprep.subr.bf16.mxu0 0
    %276 = vmatpush1.bf16.msra.mxu0 %v228
    %277 = vmatprep.subr.bf16.mxu0 0
    %278 = vmatpush2.bf16.msra.mxu0 0
    %279 = vmatprep.subr.bf16.mxu0 0
    %280 = vmatpush2.bf16.msra.mxu0 0
    %281 = vmatprep.subr.bf16.mxu0 0
    %282 = vmatpush2.bf16.msra.mxu0 0
    %283 = vmatprep.subr.bf16.mxu0 0
    %284 = vmatpush2.bf16.msra.mxu0 0
    %285 = vmatprep.subr.bf16.mxu0 0
    %286 = vmatpush2.bf16.msra.mxu0 0
    %287 = vmatprep.subr.bf16.mxu0 0
    %288 = vmatpush2.bf16.msra.mxu0 0
    %289 = vmatprep.subr.bf16.mxu0 0
    %290 = vmatpush2.bf16.msra.mxu0 0
    %291 = vmatprep.subr.bf16.mxu0 0
    %292 = vmatpush2.bf16.msra.mxu0 0
    %293 = vmatprep.mubr.bf16.mxu0 0
    %294 = vmatmul.mubr.bf16.gmra.mxu0 %v238
    %v295 = vpop.f32.mrf.mxu0
    %v296 = vadd.f32 %v190, %v295
    %v297 = vpop.f32.mrf.mxu0
    %v298 = vpop.f32.mrf.mxu0
    %v299 = vadd.f32 %v193, %v298
    %v300 = vpop.f32.mrf.mxu0
    %301 = vmatprep.mubr.bf16.mxu0 0
    %302 = vmatmul.mubr.bf16.gmra.mxu0 %v241
    %v303 = vpop.f32.mrf.mxu0
    %v304 = vadd.f32 %v190, %v303
    %v305 = vpop.f32.mrf.mxu0
    %v306 = vpop.f32.mrf.mxu0
    %v307 = vadd.f32 %v193, %v306
    %v308 = vpop.f32.mrf.mxu0
    %309 = vmatprep.mubr.bf16.mxu0 0
    %310 = vmatmul.mubr.bf16.gmra.mxu0 %v244
    %v311 = vpop.f32.mrf.mxu0
    %v312 = vadd.f32 %v190, %v311
    %v313 = vpop.f32.mrf.mxu0
    %v314 = vpop.f32.mrf.mxu0
    %v315 = vadd.f32 %v193, %v314
    %v316 = vpop.f32.mrf.mxu0
    %317 = vmatprep.mubr.bf16.mxu0 0
    %318 = vmatmul.mubr.bf16.gmra.mxu0 %v247
    %v319 = vpop.f32.mrf.mxu0
    %v320 = vadd.f32 %v190, %v319
    %v321 = vpop.f32.mrf.mxu0
    %v322 = vpop.f32.mrf.mxu0
    %v323 = vadd.f32 %v193, %v322
    %v324 = vpop.f32.mrf.mxu0
    %325 = vmatprep.mubr.bf16.mxu0 0
    %326 = vmatmul.mubr.bf16.gmra.mxu0 %v250
    %v327 = vpop.f32.mrf.mxu0
    %v328 = vadd.f32 %v190, %v327
    %v329 = vpop.f32.mrf.mxu0
    %v330 = vpop.f32.mrf.mxu0
    %v331 = vadd.f32 %v193, %v330
    %v332 = vpop.f32.mrf.mxu0
    %333 = vmatprep.mubr.bf16.mxu0 0
    %334 = vmatmul.mubr.bf16.gmra.mxu0 %v253
    %v335 = vpop.f32.mrf.mxu0
    %v336 = vadd.f32 %v190, %v335
    %v337 = vpop.f32.mrf.mxu0
    %v338 = vpop.f32.mrf.mxu0
    %v339 = vadd.f32 %v193, %v338
    %v340 = vpop.f32.mrf.mxu0
    %341 = vmatprep.mubr.bf16.mxu0 0
    %342 = vmatmul.mubr.bf16.gmra.mxu0 %v256
    %v343 = vpop.f32.mrf.mxu0
    %v344 = vadd.f32 %v190, %v343
    %v345 = vpop.f32.mrf.mxu0
    %v346 = vpop.f32.mrf.mxu0
    %v347 = vadd.f32 %v193, %v346
    %v348 = vpop.f32.mrf.mxu0
    %349 = vmatprep.mubr.bf16.mxu0 0
    %350 = vmatmul.mubr.bf16.gmra.mxu0 %v259
    %v351 = vpop.f32.mrf.mxu0
    %v352 = vadd.f32 %v190, %v351
    %v353 = vpop.f32.mrf.mxu0
    %v354 = vpop.f32.mrf.mxu0
    %v355 = vadd.f32 %v193, %v354
    %v356 = vpop.f32.mrf.mxu0
    %357 = vdwg.mxu0
    %v358 = vtanh.pop %v296
    %v359 = vtanh.pop %v299
    %v360 = vtanh.pop %v304
    %v361 = vtanh.pop %v307
    %v362 = vtanh.pop %v312
    %v363 = vtanh.pop %v315
    %v364 = vtanh.pop %v320
    %v365 = vtanh.pop %v323
    %v366 = vtanh.pop %v328
    %v367 = vtanh.pop %v331
    %v368 = vtanh.pop %v336
    %v369 = vtanh.pop %v339
    %v370 = vtanh.pop %v344
    %v371 = vtanh.pop %v347
    %v372 = vtanh.pop %v352
    %v373 = vtanh.pop %v355
    %v374 = vpack.c.bf16 %v359, %v358
    %v375 = vpack.c.bf16 %v361, %v360
    %v376 = vpack.c.bf16 %v363, %v362
    %v377 = vpack.c.bf16 %v365, %v364
    %v378 = vpack.c.bf16 %v367, %v366
    %v379 = vpack.c.bf16 %v369, %v368
    %v380 = vpack.c.bf16 %v371, %v370
    %v381 = vpack.c.bf16 %v373, %v372
    %v382 = vld [vmem:[%s5] sm:$0xf]
    %v383 = vld [vmem:[%s5 + $0x4] sm:$0xf]
    %v384 = vld [vmem:[%s5 + $0x8] sm:$0xf]
    %v385 = vld [vmem:[%s5 + $0xc] sm:$0xf]
    %v390 = vunpack.c.l.b16 %v382
    %v391 = vunpack.c.l.b16 %v383
    %v392 = vunpack.c.l.b16 %v384
    %v393 = vunpack.c.l.b16 %v385
    %v394 = vpack.c.b16 %v391, %v390
    %v395 = vpack.c.b16 %v393, %v392
    %v399 = vsel %vm151, %v374, 0
    %v402 = vsel %vm151, %v375, 0
    %v405 = vsel %vm151, %v376, 0
    %v408 = vsel %vm151, %v377, 0
    %v411 = vsel %vm151, %v378, 0
    %v414 = vsel %vm151, %v379, 0
    %v417 = vsel %vm151, %v380, 0
    %v420 = vsel %vm151, %v381, 0
    %422 = vmatprep.subr.bf16.mxu0 0
    %423 = vmatpush1.bf16.msra.mxu0 0
    %424 = vmatprep.subr.bf16.mxu0 0
    %425 = vmatpush1.bf16.msra.mxu0 0
    %426 = vmatprep.subr.bf16.mxu0 0
    %427 = vmatpush1.bf16.msra.mxu0 0
    %428 = vmatprep.subr.bf16.mxu0 0
    %429 = vmatpush1.bf16.msra.mxu0 0
    %430 = vmatprep.subr.bf16.mxu0 0
    %431 = vmatpush1.bf16.msra.mxu0 0
    %432 = vmatprep.subr.bf16.mxu0 0
    %433 = vmatpush1.bf16.msra.mxu0 0
    %434 = vmatprep.subr.bf16.mxu0 0
    %435 = vmatpush1.bf16.msra.mxu0 %v395
    %436 = vmatprep.subr.bf16.mxu0 0
    %437 = vmatpush1.bf16.msra.mxu0 %v394
    %438 = vmatprep.subr.bf16.mxu0 0
    %439 = vmatpush2.bf16.msra.mxu0 0
    %440 = vmatprep.subr.bf16.mxu0 0
    %441 = vmatpush2.bf16.msra.mxu0 0
    %442 = vmatprep.subr.bf16.mxu0 0
    %443 = vmatpush2.bf16.msra.mxu0 0
    %444 = vmatprep.subr.bf16.mxu0 0
    %445 = vmatpush2.bf16.msra.mxu0 0
    %446 = vmatprep.subr.bf16.mxu0 0
    %447 = vmatpush2.bf16.msra.mxu0 0
    %448 = vmatprep.subr.bf16.mxu0 0
    %449 = vmatpush2.bf16.msra.mxu0 0
    %450 = vmatprep.subr.bf16.mxu0 0
    %451 = vmatpush2.bf16.msra.mxu0 0
    %452 = vmatprep.subr.bf16.mxu0 0
    %453 = vmatpush2.bf16.msra.mxu0 0
    %454 = vmatprep.mubr.bf16.mxu0 0
    %455 = vmatmul.mubr.bf16.gmra.mxu0 %v399
    %v456 = vpop.f32.mrf.mxu0
    %v457 = vadd.f32 0.0, %v456
    %v458 = vpop.f32.mrf.mxu0
    %v459 = vpop.f32.mrf.mxu0
    %v460 = vadd.f32 0.0, %v459
    %v461 = vpop.f32.mrf.mxu0
    %462 = vmatprep.mubr.bf16.mxu0 0
    %463 = vmatmul.mubr.bf16.gmra.mxu0 %v402
    %v464 = vpop.f32.mrf.mxu0
    %v465 = vadd.f32 0.0, %v464
    %v466 = vpop.f32.mrf.mxu0
    %v467 = vpop.f32.mrf.mxu0
    %v468 = vadd.f32 0.0, %v467
    %v469 = vpop.f32.mrf.mxu0
    %470 = vmatprep.mubr.bf16.mxu0 0
    %471 = vmatmul.mubr.bf16.gmra.mxu0 %v405
    %v472 = vpop.f32.mrf.mxu0
    %v473 = vadd.f32 0.0, %v472
    %v474 = vpop.f32.mrf.mxu0
    %v475 = vpop.f32.mrf.mxu0
    %v476 = vadd.f32 0.0, %v475
    %v477 = vpop.f32.mrf.mxu0
    %478 = vmatprep.mubr.bf16.mxu0 0
    %479 = vmatmul.mubr.bf16.gmra.mxu0 %v408
    %v480 = vpop.f32.mrf.mxu0
    %v481 = vadd.f32 0.0, %v480
    %v482 = vpop.f32.mrf.mxu0
    %v483 = vpop.f32.mrf.mxu0
    %v484 = vadd.f32 0.0, %v483
    %v485 = vpop.f32.mrf.mxu0
    %486 = vmatprep.mubr.bf16.mxu0 0
    %487 = vmatmul.mubr.bf16.gmra.mxu0 %v411
    %v488 = vpop.f32.mrf.mxu0
    %v489 = vadd.f32 0.0, %v488
    %v490 = vpop.f32.mrf.mxu0
    %v491 = vpop.f32.mrf.mxu0
    %v492 = vadd.f32 0.0, %v491
    %v493 = vpop.f32.mrf.mxu0
    %494 = vmatprep.mubr.bf16.mxu0 0
    %495 = vmatmul.mubr.bf16.gmra.mxu0 %v414
    %v496 = vpop.f32.mrf.mxu0
    %v497 = vadd.f32 0.0, %v496
    %v498 = vpop.f32.mrf.mxu0
    %v499 = vpop.f32.mrf.mxu0
    %v500 = vadd.f32 0.0, %v499
    %v501 = vpop.f32.mrf.mxu0
    %502 = vmatprep.mubr.bf16.mxu0 0
    %503 = vmatmul.mubr.bf16.gmra.mxu0 %v417
    %v504 = vpop.f32.mrf.mxu0
    %v505 = vadd.f32 0.0, %v504
    %v506 = vpop.f32.mrf.mxu0
    %v507 = vpop.f32.mrf.mxu0
    %v508 = vadd.f32 0.0, %v507
    %v509 = vpop.f32.mrf.mxu0
    %510 = vmatprep.mubr.bf16.mxu0 0
    %511 = vmatmul.mubr.bf16.gmra.mxu0 %v420
    %v512 = vpop.f32.mrf.mxu0
    %v513 = vadd.f32 0.0, %v512
    %v514 = vpop.f32.mrf.mxu0
    %v515 = vpop.f32.mrf.mxu0
    %v516 = vadd.f32 0.0, %v515
    %v517 = vpop.f32.mrf.mxu0
    %518 = vdwg.mxu0
    %vm519 = vcmask 7168
    %v520 = vsel %vm519, %v457, -inf
    %v521 = vsel %vm519, %v465, -inf
    %v522 = vsel %vm519, %v473, -inf
    %v523 = vmax.f32 %v520, %v522
    %v524 = vsel %vm519, %v481, -inf
    %v525 = vmax.f32 %v521, %v524
    %v526 = vsel %vm519, %v489, -inf
    %v527 = vmax.f32 %v523, %v526
    %v528 = vsel %vm519, %v497, -inf
    %v529 = vmax.f32 %v525, %v528
    %v530 = vsel %vm519, %v505, -inf
    %v531 = vmax.f32 %v527, %v530
    %v532 = vsel %vm519, %v513, -inf
    %v533 = vmax.f32 %v529, %v532
    %v534 = vmax.f32 %v531, %v533
    %v535 = vsel %vm519, %v460, -inf
    %v536 = vsel %vm519, %v468, -inf
    %v537 = vsel %vm519, %v476, -inf
    %v538 = vmax.f32 %v535, %v537
    %v539 = vsel %vm519, %v484, -inf
    %v540 = vmax.f32 %v536, %v539
    %v541 = vsel %vm519, %v492, -inf
    %v542 = vmax.f32 %v538, %v541
    %v543 = vsel %vm519, %v500, -inf
    %v544 = vmax.f32 %v540, %v543
    %v545 = vsel %vm519, %v508, -inf
    %v546 = vmax.f32 %v542, %v545
    %v547 = vsel %vm519, %v516, -inf
    %v548 = vmax.f32 %v544, %v547
    %v549 = vmax.f32 %v546, %v548
    %v550 = vsub.f32 %v457, %v534
    %v551 = vsub.f32 %v460, %v549
    %v552 = vsub.f32 %v465, %v534
    %v553 = vsub.f32 %v468, %v549
    %v554 = vsub.f32 %v473, %v534
    %v555 = vsub.f32 %v476, %v549
    %v556 = vsub.f32 %v481, %v534
    %v557 = vsub.f32 %v484, %v549
    %v558 = vsub.f32 %v489, %v534
    %v559 = vsub.f32 %v492, %v549
    %v560 = vsub.f32 %v497, %v534
    %v561 = vsub.f32 %v500, %v549
    %v562 = vsub.f32 %v505, %v534
    %v563 = vsub.f32 %v508, %v549
    %v564 = vsub.f32 %v513, %v534
    %v565 = vsub.f32 %v516, %v549
    %v566 = vmul.f32 %v550, 1.442695
    %v567 = vpow.pop %v566
    %v568 = vmul.f32 %v551, 1.442695
    %v569 = vpow.pop %v568
    %v570 = vmul.f32 %v552, 1.442695
    %v571 = vpow.pop %v570
    %v572 = vmul.f32 %v553, 1.442695
    %v573 = vpow.pop %v572
    %v574 = vmul.f32 %v554, 1.442695
    %v575 = vpow.pop %v574
    %v576 = vmul.f32 %v555, 1.442695
    %v577 = vpow.pop %v576
    %v578 = vmul.f32 %v556, 1.442695
    %v579 = vpow.pop %v578
    %v580 = vmul.f32 %v557, 1.442695
    %v581 = vpow.pop %v580
    %v582 = vmul.f32 %v558, 1.442695
    %v583 = vpow.pop %v582
    %v584 = vmul.f32 %v559, 1.442695
    %v585 = vpow.pop %v584
    %v586 = vmul.f32 %v560, 1.442695
    %v587 = vpow.pop %v586
    %v588 = vmul.f32 %v561, 1.442695
    %v589 = vpow.pop %v588
    %v590 = vmul.f32 %v562, 1.442695
    %v591 = vpow.pop %v590
    %v592 = vmul.f32 %v563, 1.442695
    %v593 = vpow.pop %v592
    %v594 = vmul.f32 %v564, 1.442695
    %v595 = vpow.pop %v594
    %v596 = vmul.f32 %v565, 1.442695
    %v597 = vpow.pop %v596
    %v598 = vsel %vm519, %v567, 0.0
    %v599 = vsel %vm519, %v571, 0.0
    %v600 = vadd.f32 %v598, %v599
    %v601 = vsel %vm519, %v575, 0.0
    %v602 = vadd.f32 %v600, %v601
    %v603 = vsel %vm519, %v579, 0.0
    %v604 = vadd.f32 %v602, %v603
    %v605 = vsel %vm519, %v583, 0.0
    %v606 = vadd.f32 %v604, %v605
    %v607 = vsel %vm519, %v587, 0.0
    %v608 = vadd.f32 %v606, %v607
    %v609 = vsel %vm519, %v591, 0.0
    %v610 = vadd.f32 %v608, %v609
    %v611 = vsel %vm519, %v595, 0.0
    %v612 = vadd.f32 %v610, %v611
    %v613 = vsel %vm519, %v569, 0.0
    %v614 = vsel %vm519, %v573, 0.0
    %v615 = vadd.f32 %v613, %v614
    %v616 = vsel %vm519, %v577, 0.0
    %v617 = vadd.f32 %v615, %v616
    %v618 = vsel %vm519, %v581, 0.0
    %v619 = vadd.f32 %v617, %v618
    %v620 = vsel %vm519, %v585, 0.0
    %v621 = vadd.f32 %v619, %v620
    %v622 = vsel %vm519, %v589, 0.0
    %v623 = vadd.f32 %v621, %v622
    %v624 = vsel %vm519, %v593, 0.0
    %v625 = vadd.f32 %v623, %v624
    %v626 = vsel %vm519, %v597, 0.0
    %v627 = vadd.f32 %v625, %v626
    %v628 = vrcp.pop %v612
    %v629 = vmul.f32 %v567, %v628
    %v630 = vrcp.pop %v627
    %v631 = vmul.f32 %v569, %v630
    %v632 = vmul.f32 %v571, %v628
    %v633 = vmul.f32 %v573, %v630
    %v634 = vmul.f32 %v575, %v628
    %v635 = vmul.f32 %v577, %v630
    %v636 = vmul.f32 %v579, %v628
    %v637 = vmul.f32 %v581, %v630
    %v638 = vmul.f32 %v583, %v628
    %v639 = vmul.f32 %v585, %v630
    %v640 = vmul.f32 %v587, %v628
    %v641 = vmul.f32 %v589, %v630
    %v642 = vmul.f32 %v591, %v628
    %v643 = vmul.f32 %v593, %v630
    %v644 = vmul.f32 %v595, %v628
    %v645 = vmul.f32 %v597, %v630
    %647 = vset.pattern.permute.xlu0 0
    %648 = vperm.xlu0 %647, %v629
    %v649 = vpop.permute.xlu0 %648
    %652 = vset.pattern.permute.xlu0 0
    %653 = vperm.xlu0 %652, %v631
    %v654 = vpop.permute.xlu0 %653
    %657 = vset.pattern.permute.xlu0 0
    %658 = vperm.xlu0 %657, %v632
    %v659 = vpop.permute.xlu0 %658
    %662 = vset.pattern.permute.xlu0 0
    %663 = vperm.xlu0 %662, %v633
    %v664 = vpop.permute.xlu0 %663
    %667 = vset.pattern.permute.xlu0 0
    %668 = vperm.xlu0 %667, %v634
    %v669 = vpop.permute.xlu0 %668
    %672 = vset.pattern.permute.xlu0 0
    %673 = vperm.xlu0 %672, %v635
    %v674 = vpop.permute.xlu0 %673
    %677 = vset.pattern.permute.xlu0 0
    %678 = vperm.xlu0 %677, %v636
    %v679 = vpop.permute.xlu0 %678
    %682 = vset.pattern.permute.xlu0 0
    %683 = vperm.xlu0 %682, %v637
    %v684 = vpop.permute.xlu0 %683
    %687 = vset.pattern.permute.xlu0 0
    %688 = vperm.xlu0 %687, %v638
    %v689 = vpop.permute.xlu0 %688
    %692 = vset.pattern.permute.xlu0 0
    %693 = vperm.xlu0 %692, %v639
    %v694 = vpop.permute.xlu0 %693
    %697 = vset.pattern.permute.xlu0 0
    %698 = vperm.xlu0 %697, %v640
    %v699 = vpop.permute.xlu0 %698
    %702 = vset.pattern.permute.xlu0 0
    %703 = vperm.xlu0 %702, %v641
    %v704 = vpop.permute.xlu0 %703
    %707 = vset.pattern.permute.xlu0 0
    %708 = vperm.xlu0 %707, %v642
    %v709 = vpop.permute.xlu0 %708
    %712 = vset.pattern.permute.xlu0 0
    %713 = vperm.xlu0 %712, %v643
    %v714 = vpop.permute.xlu0 %713
    %717 = vset.pattern.permute.xlu0 0
    %718 = vperm.xlu0 %717, %v644
    %v719 = vpop.permute.xlu0 %718
    %722 = vset.pattern.permute.xlu0 0
    %723 = vperm.xlu0 %722, %v645
    %v724 = vpop.permute.xlu0 %723
    %v726 = vmul.f32 %v649, %v118
    %v727 = vmul.f32 %v654, %v119
    %v728 = vmul.f32 %v659, %v120
    %v729 = vmul.f32 %v664, %v121
    %v730 = vmul.f32 %v669, %v122
    %v731 = vmul.f32 %v674, %v123
    %v732 = vmul.f32 %v679, %v124
    %v733 = vmul.f32 %v684, %v125
    %v734 = vmul.f32 %v689, %v126
    %v735 = vmul.f32 %v694, %v127
    %v736 = vmul.f32 %v699, %v128
    %v737 = vmul.f32 %v704, %v129
    %v738 = vmul.f32 %v709, %v130
    %v739 = vmul.f32 %v714, %v131
    %v740 = vmul.f32 %v719, %v132
    %v741 = vmul.f32 %v724, %v133
    %v742 = vsel %vm236, %v726, 0.0
    %v743 = vsel %vm236, %v728, 0.0
    %v744 = vadd.f32 %v742, %v743
    %v745 = vsel %vm236, %v730, 0.0
    %v746 = vadd.f32 %v744, %v745
    %v747 = vsel %vm236, %v732, 0.0
    %v748 = vadd.f32 %v746, %v747
    %v749 = vsel %vm236, %v734, 0.0
    %v750 = vadd.f32 %v748, %v749
    %v751 = vsel %vm236, %v736, 0.0
    %v752 = vadd.f32 %v750, %v751
    %v753 = vsel %vm236, %v738, 0.0
    %v754 = vadd.f32 %v752, %v753
    %v755 = vsel %vm236, %v740, 0.0
    %v756 = vadd.f32 %v754, %v755
    %v757 = vsel %vm236, %v727, 0.0
    %v758 = vsel %vm236, %v729, 0.0
    %v759 = vadd.f32 %v757, %v758
    %v760 = vsel %vm236, %v731, 0.0
    %v761 = vadd.f32 %v759, %v760
    %v762 = vsel %vm236, %v733, 0.0
    %v763 = vadd.f32 %v761, %v762
    %v764 = vsel %vm236, %v735, 0.0
    %v765 = vadd.f32 %v763, %v764
    %v766 = vsel %vm236, %v737, 0.0
    %v767 = vadd.f32 %v765, %v766
    %v768 = vsel %vm236, %v739, 0.0
    %v769 = vadd.f32 %v767, %v768
    %v770 = vsel %vm236, %v741, 0.0
    %v771 = vadd.f32 %v769, %v770
    %774 = vrot.lane.b32.xlu0 %v756, 16
    %v775 = vpop.permute.xlu0 %774
    %776 = vrot.lane.b32.xlu0 %v771, 16
    %v777 = vpop.permute.xlu0 %776
    %vm780 = vcmask 130048
    %v781 = vsel %vm780, %v114, %v775
    %v782 = vsel %vm780, %v115, %v777
    %v783 = vpack.c.bf16 %v782, %v781
    %v784 = vld [vmem:[#allocation8] sm:$0xf]
    %v785 = vld [vmem:[#allocation8 + $0x4] sm:$0xf]
    %v786 = vld [vmem:[#allocation8 + $0x8] sm:$0xf]
    %v787 = vld [vmem:[#allocation8 + $0xc] sm:$0xf]
    %v788 = vld [vmem:[#allocation8 + $0x10] sm:$0xf]
    %v789 = vld [vmem:[#allocation8 + $0x14] sm:$0xf]
    %v790 = vld [vmem:[#allocation8 + $0x18] sm:$0xf]
    %v791 = vld [vmem:[#allocation8 + $0x1c] sm:$0xf]
    %v792 = vld [vmem:[#allocation8 + $0x20] sm:$0xf]
    %v793 = vld [vmem:[#allocation8 + $0x24] sm:$0xf]
    %v794 = vld [vmem:[%s8] sm:$0x1]
    %v796 = vlaneseq
    %v797 = vshrl.u32 %v796, 7
    %v798 = vsub.s32 0, %v797
    %v799 = vrot.slane %v794, %v798
    %v811 = vunpack.c.l.b16 %v784
    %v812 = vunpack.c.l.b16 %v785
    %v813 = vunpack.c.l.b16 %v786
    %v814 = vunpack.c.l.b16 %v787
    %v815 = vunpack.c.l.b16 %v788
    %v816 = vunpack.c.l.b16 %v789
    %v817 = vunpack.c.l.b16 %v790
    %v818 = vunpack.c.l.b16 %v791
    %v819 = vunpack.c.l.b16 %v792
    %v820 = vunpack.c.l.b16 %v793
    %v821 = vpack.c.b16 %v812, %v811
    %v822 = vpack.c.b16 %v814, %v813
    %v823 = vpack.c.b16 %v816, %v815
    %v824 = vpack.c.b16 %v818, %v817
    %v825 = vpack.c.b16 %v820, %v819
    %vm831 = vcmask 654336
    %v833 = vsel %vm831, %v783, 0
    %835 = vmatprep.subr.bf16.mxu0 0
    %836 = vmatpush1.bf16.msra.mxu0 0
    %837 = vmatprep.subr.bf16.mxu0 0
    %838 = vmatpush1.bf16.msra.mxu0 0
    %839 = vmatprep.subr.bf16.mxu0 0
    %840 = vmatpush1.bf16.msra.mxu0 0
    %841 = vmatprep.subr.bf16.mxu0 0
    %842 = vmatpush1.bf16.msra.mxu0 %v825
    %843 = vmatprep.subr.bf16.mxu0 0
    %844 = vmatpush1.bf16.msra.mxu0 %v824
    %845 = vmatprep.subr.bf16.mxu0 0
    %846 = vmatpush1.bf16.msra.mxu0 %v823
    %847 = vmatprep.subr.bf16.mxu0 0
    %848 = vmatpush1.bf16.msra.mxu0 %v822
    %849 = vmatprep.subr.bf16.mxu0 0
    %850 = vmatpush1.bf16.msra.mxu0 %v821
    %851 = vmatprep.subr.bf16.mxu0 0
    %852 = vmatpush2.bf16.msra.mxu0 0
    %853 = vmatprep.subr.bf16.mxu0 0
    %854 = vmatpush2.bf16.msra.mxu0 0
    %855 = vmatprep.subr.bf16.mxu0 0
    %856 = vmatpush2.bf16.msra.mxu0 0
    %857 = vmatprep.subr.bf16.mxu0 0
    %858 = vmatpush2.bf16.msra.mxu0 0
    %859 = vmatprep.subr.bf16.mxu0 0
    %860 = vmatpush2.bf16.msra.mxu0 0
    %861 = vmatprep.subr.bf16.mxu0 0
    %862 = vmatpush2.bf16.msra.mxu0 0
    %863 = vmatprep.subr.bf16.mxu0 0
    %864 = vmatpush2.bf16.msra.mxu0 0
    %865 = vmatprep.subr.bf16.mxu0 0
    %866 = vmatpush2.bf16.msra.mxu0 0
    %867 = vmatprep.mubr.bf16.mxu0 0
    %868 = vmatmul.mubr.bf16.gmra.mxu0 %v833
    %v869 = vpop.f32.mrf.mxu0
    %v870 = vadd.f32 %v799, %v869
    %v871 = vpop.f32.mrf.mxu0
    %v872 = vpop.f32.mrf.mxu0
    %v873 = vadd.f32 %v799, %v872
    %v874 = vpop.f32.mrf.mxu0
    %875 = vdwg.mxu0
    %v876 = vld [vmem:[#allocation10] sm:$0xf]
    %v877 = vld [vmem:[#allocation10 + $0x4] sm:$0xf]
    %v878 = vld [vmem:[#allocation10 + $0x8] sm:$0xf]
    %v879 = vld [vmem:[#allocation10 + $0xc] sm:$0xf]
    %v880 = vld [vmem:[%s9] sm:$0x1]
    %v882 = vlaneseq
    %v883 = vshrl.u32 %v882, 7
    %v884 = vsub.s32 0, %v883
    %v885 = vrot.slane %v880, %v884
    %v891 = vunpack.c.l.b16 %v876
    %v892 = vunpack.c.l.b16 %v877
    %v893 = vunpack.c.l.b16 %v878
    %v894 = vunpack.c.l.b16 %v879
    %v895 = vpack.c.b16 %v892, %v891
    %v896 = vpack.c.b16 %v894, %v893
    %899 = vmatprep.subr.bf16.mxu0 0
    %900 = vmatpush1.bf16.msra.mxu0 0
    %901 = vmatprep.subr.bf16.mxu0 0
    %902 = vmatpush1.bf16.msra.mxu0 0
    %903 = vmatprep.subr.bf16.mxu0 0
    %904 = vmatpush1.bf16.msra.mxu0 0
    %905 = vmatprep.subr.bf16.mxu0 0
    %906 = vmatpush1.bf16.msra.mxu0 0
    %907 = vmatprep.subr.bf16.mxu0 0
    %908 = vmatpush1.bf16.msra.mxu0 0
    %909 = vmatprep.subr.bf16.mxu0 0
    %910 = vmatpush1.bf16.msra.mxu0 0
    %911 = vmatprep.subr.bf16.mxu0 0
    %912 = vmatpush1.bf16.msra.mxu0 %v896
    %913 = vmatprep.subr.bf16.mxu0 0
    %914 = vmatpush1.bf16.msra.mxu0 %v895
    %915 = vmatprep.subr.bf16.mxu0 0
    %916 = vmatpush2.bf16.msra.mxu0 0
    %917 = vmatprep.subr.bf16.mxu0 0
    %918 = vmatpush2.bf16.msra.mxu0 0
    %919 = vmatprep.subr.bf16.mxu0 0
    %920 = vmatpush2.bf16.msra.mxu0 0
    %921 = vmatprep.subr.bf16.mxu0 0
    %922 = vmatpush2.bf16.msra.mxu0 0
    %923 = vmatprep.subr.bf16.mxu0 0
    %924 = vmatpush2.bf16.msra.mxu0 0
    %925 = vmatprep.subr.bf16.mxu0 0
    %926 = vmatpush2.bf16.msra.mxu0 0
    %927 = vmatprep.subr.bf16.mxu0 0
    %928 = vmatpush2.bf16.msra.mxu0 0
    %929 = vmatprep.subr.bf16.mxu0 0
    %930 = vmatpush2.bf16.msra.mxu0 0
    %931 = vmatprep.mubr.bf16.mxu0 0
    %932 = vmatmul.mubr.bf16.gmra.mxu0 %v153
    %v933 = vpop.f32.mrf.mxu0
    %v934 = vadd.f32 %v885, %v933
    %v935 = vpop.f32.mrf.mxu0
    %v936 = vpop.f32.mrf.mxu0
    %v937 = vadd.f32 %v885, %v936
    %v938 = vpop.f32.mrf.mxu0
    %939 = vdwg.mxu0
    %v940 = vadd.f32 %v870, %v934
    %v941 = vadd.f32 %v873, %v937
    %v942 = vxor.u32 %v940, 2147483648
    %v943 = vxor.u32 %v941, 2147483648
    %v944 = vmul.f32 %v942, 1.442695
    %v945 = vpow.pop %v944
    %v946 = vmul.f32 %v943, 1.442695
    %v947 = vpow.pop %v946
    %v948 = vadd.f32 %v945, 1.0
    %v949 = vadd.f32 %v947, 1.0
    %v950 = vrcp.pop %v948
    %v951 = vmul.f32 1.0, %v950
    %v952 = vrcp.pop %v949
    %v953 = vmul.f32 1.0, %v952
    %956 = vrot.lane.b32.xlu0 %v934, 64
    %v957 = vpop.permute.xlu0 %956
    %958 = vrot.lane.b32.xlu0 %v937, 64
    %v959 = vpop.permute.xlu0 %958
    %v962 = vmul.f32 %v951, %v957
    %v963 = vmul.f32 %v953, %v959
    %966 = vrot.lane.b32.xlu0 %v962, 64
    %v967 = vpop.permute.xlu0 %966
    %968 = vrot.lane.b32.xlu0 %v963, 64
    %v969 = vpop.permute.xlu0 %968
    %v972 = vadd.f32 %v870, %v967
    %v973 = vadd.f32 %v873, %v969
    %v974 = vtanh.pop %v972
    %v975 = vtanh.pop %v973
    %v976 = vsub.f32 1.0, %v951
    %v977 = vsub.f32 1.0, %v953
    %980 = vrot.lane.b32.xlu0 %v974, 96
    %v981 = vpop.permute.xlu0 %980
    %982 = vrot.lane.b32.xlu0 %v975, 96
    %v983 = vpop.permute.xlu0 %982
    %v986 = vmul.f32 %v976, %v981
    %v987 = vmul.f32 %v977, %v983
    %990 = vrot.lane.b32.xlu0 %v116, 32
    %v991 = vpop.permute.xlu0 %990
    %992 = vrot.lane.b32.xlu0 %v117, 32
    %v993 = vpop.permute.xlu0 %992
    %v996 = vmul.f32 %v951, %v991
    %v997 = vmul.f32 %v953, %v993
    %v998 = vadd.f32 %v986, %v996
    %v999 = vadd.f32 %v987, %v997
    %1002 = vrot.lane.b32.xlu0 %v998, 96
    %v1003 = vpop.permute.xlu0 %1002
    %1004 = vrot.lane.b32.xlu0 %v999, 96
    %v1005 = vpop.permute.xlu0 %1004
    %1008 = vrot.lane.b32.xlu0 %v756, 32
    %v1009 = vpop.permute.xlu0 %1008
    %1010 = vrot.lane.b32.xlu0 %v771, 32
    %v1011 = vpop.permute.xlu0 %1010
    %1016 = vrot.lane.b32.xlu0 %v114, 96
    %v1017 = vpop.permute.xlu0 %1016
    %1018 = vrot.lane.b32.xlu0 %v115, 96
    %v1019 = vpop.permute.xlu0 %1018
    %v1022 = vsel %vm151, %v1003, %v1009
    %v1023 = vsel %vm151, %v1005, %v1011
    %vm1024 = vcmask 785408
    %v1025 = vsel %vm1024, %v1022, %v1017
    %v1026 = vsel %vm1024, %v1023, %v1019
    %v1027 = vpack.c.bf16 %v1026, %v1025
    %v1028 = vld [vmem:[%s10] sm:$0xf]
    %v1029 = vld [vmem:[%s10 + $0x4] sm:$0xf]
    %v1030 = vld [vmem:[%s10 + $0x8] sm:$0xf]
    %v1031 = vld [vmem:[%s10 + $0xc] sm:$0xf]
    %v1032 = vld [vmem:[%s10 + $0x10] sm:$0xf]
    %v1033 = vld [vmem:[%s10 + $0x14] sm:$0xf]
    %v1034 = vld [vmem:[%s10 + $0x18] sm:$0xf]
    %v1035 = vld [vmem:[%s10 + $0x1c] sm:$0xf]
    %v1036 = vld [vmem:[%s10 + $0x20] sm:$0xf]
    %v1037 = vld [vmem:[%s10 + $0x24] sm:$0xf]
    %v1038 = vld [vmem:[%s10 + $0x28] sm:$0xf]
    %v1039 = vld [vmem:[%s10 + $0x2c] sm:$0xf]
    %v1040 = vld [vmem:[%s10 + $0x30] sm:$0xf]
    %v1041 = vld [vmem:[%s10 + $0x34] sm:$0xf]
    %v1042 = vld [vmem:[%s11] sm:$0x1]
    %v1044 = vlaneseq
    %v1045 = vshrl.u32 %v1044, 7
    %v1046 = vsub.s32 0, %v1045
    %v1047 = vrot.slane %v1042, %v1046
    %v1063 = vunpack.c.l.b16 %v1028
    %v1064 = vunpack.c.l.b16 %v1029
    %v1065 = vunpack.c.l.b16 %v1030
    %v1066 = vunpack.c.l.b16 %v1031
    %v1067 = vunpack.c.l.b16 %v1032
    %v1068 = vunpack.c.l.b16 %v1033
    %v1069 = vunpack.c.l.b16 %v1034
    %v1070 = vunpack.c.l.b16 %v1035
    %v1071 = vunpack.c.l.b16 %v1036
    %v1072 = vunpack.c.l.b16 %v1037
    %v1073 = vunpack.c.l.b16 %v1038
    %v1074 = vunpack.c.l.b16 %v1039
    %v1075 = vunpack.c.l.b16 %v1040
    %v1076 = vunpack.c.l.b16 %v1041
    %v1077 = vpack.c.b16 %v1064, %v1063
    %v1078 = vpack.c.b16 %v1066, %v1065
    %v1079 = vpack.c.b16 %v1068, %v1067
    %v1080 = vpack.c.b16 %v1070, %v1069
    %v1081 = vpack.c.b16 %v1072, %v1071
    %v1082 = vpack.c.b16 %v1074, %v1073
    %v1083 = vpack.c.b16 %v1076, %v1075
    %vm1091 = vcmask 916480
    %v1093 = vsel %vm1091, %v1027, 0
    %1095 = vmatprep.subr.bf16.mxu0 0
    %1096 = vmatpush1.bf16.msra.mxu0 0
    %1097 = vmatprep.subr.bf16.mxu0 0
    %1098 = vmatpush1.bf16.msra.mxu0 %v1083
    %1099 = vmatprep.subr.bf16.mxu0 0
    %1100 = vmatpush1.bf16.msra.mxu0 %v1082
    %1101 = vmatprep.subr.bf16.mxu0 0
    %1102 = vmatpush1.bf16.msra.mxu0 %v1081
    %1103 = vmatprep.subr.bf16.mxu0 0
    %1104 = vmatpush1.bf16.msra.mxu0 %v1080
    %1105 = vmatprep.subr.bf16.mxu0 0
    %1106 = vmatpush1.bf16.msra.mxu0 %v1079
    %1107 = vmatprep.subr.bf16.mxu0 0
    %1108 = vmatpush1.bf16.msra.mxu0 %v1078
    %1109 = vmatprep.subr.bf16.mxu0 0
    %1110 = vmatpush1.bf16.msra.mxu0 %v1077
    %1111 = vmatprep.subr.bf16.mxu0 0
    %1112 = vmatpush2.bf16.msra.mxu0 0
    %1113 = vmatprep.subr.bf16.mxu0 0
    %1114 = vmatpush2.bf16.msra.mxu0 0
    %1115 = vmatprep.subr.bf16.mxu0 0
    %1116 = vmatpush2.bf16.msra.mxu0 0
    %1117 = vmatprep.subr.bf16.mxu0 0
    %1118 = vmatpush2.bf16.msra.mxu0 0
    %1119 = vmatprep.subr.bf16.mxu0 0
    %1120 = vmatpush2.bf16.msra.mxu0 0
    %1121 = vmatprep.subr.bf16.mxu0 0
    %1122 = vmatpush2.bf16.msra.mxu0 0
    %1123 = vmatprep.subr.bf16.mxu0 0
    %1124 = vmatpush2.bf16.msra.mxu0 0
    %1125 = vmatprep.subr.bf16.mxu0 0
    %1126 = vmatpush2.bf16.msra.mxu0 0
    %1127 = vmatprep.mubr.bf16.mxu0 0
    %1128 = vmatmul.mubr.bf16.gmra.mxu0 %v1093
    %v1129 = vpop.f32.mrf.mxu0
    %v1130 = vadd.f32 %v1047, %v1129
    %v1131 = vpop.f32.mrf.mxu0
    %v1132 = vpop.f32.mrf.mxu0
    %v1133 = vadd.f32 %v1047, %v1132
    %v1134 = vpop.f32.mrf.mxu0
    %1135 = vdwg.mxu0
    %1136 = vst [vmem:[#allocation11] sm:$0xff] %v1130
    %1137 = vst [vmem:[#allocation11 + $0x8] sm:$0xff] %v1133
    %1138 = vst.msk [vmem:[#allocation12] sm:$0xff] %vm151, %v1003
    %1139 = vst.msk [vmem:[#allocation12 + $0x8] sm:$0xff] %vm151, %v1005
    // Predicated region
    $region70: #{tpu_custom_call.1} parent=1 // pred_check
      _
    $region71: #{tpu_custom_call.1} parent=1 // pred_check_branch
      %1141 = sbr.rel (0) target = $region73
    $region72: #{tpu_custom_call.1} parent=1 // pred_region
      %s1143 = ssub.s32 256, 256
      %1144 = vsyncadd [#allocation4], %s1143
      %s1145 = sshll.u32 [#allocation11], 4
      %s1146 = int_to_ptr.vmem [resolvable:$true] %s1145
      %1151 = dma.vmem_to_hbm [thread:$0]  %s1146, 256, %s12, [#allocation4], 128, 128, 8
    $region73: #{tpu_custom_call.1} parent=1 // pred_fallthru
      _
    // Predicated region
    $region74: #{tpu_custom_call.1} parent=1 // pred_check
      _
    $region75: #{tpu_custom_call.1} parent=1 // pred_check_branch
      %1153 = sbr.rel (0) target = $region77
    $region76: #{tpu_custom_call.1} parent=1 // pred_region
      %s1155 = ssub.s32 256, 256
      %1156 = vsyncadd [#allocation13], %s1155
      %s1157 = sshll.u32 [#allocation12], 4
      %s1158 = int_to_ptr.vmem [resolvable:$true] %s1157
      %1163 = dma.vmem_to_hbm [thread:$0]  %s1158, 256, %s13, [#allocation13], 128, 128, 8
    $region77: #{tpu_custom_call.1} parent=1 // pred_fallthru
      _
    // Predicated region
    $region78: #{tpu_custom_call.1} parent=1 // pred_check
      _
    $region79: #{tpu_custom_call.1} parent=1 // pred_check_branch
      %1165 = sbr.rel (0) target = $region81
    $region80: #{tpu_custom_call.1} parent=1 // pred_region
      %1166 = dma.done [#allocation4], 256
    $region81: #{tpu_custom_call.1} parent=1 // pred_fallthru
      _
    // Predicated region
    $region82: #{tpu_custom_call.1} parent=1 // pred_check
      _
    $region83: #{tpu_custom_call.1} parent=1 // pred_check_branch
      %1168 = sbr.rel (0) target = $region85
    $region84: #{tpu_custom_call.1} parent=1 // pred_region
      %1169 = dma.done [#allocation13], 256
    $region85: #{tpu_custom_call.1} parent=1 // pred_fallthru
      _
    %1170 = vsyncpa [#allocation3], 1
    %1171 = vsyncpa [#allocation6], 1
    %1172 = vsyncpa [#allocation9], 1
    %1173 = vsyncpa [#allocation4], 1
    %1174 = vsyncpa [#allocation13], 1

</llo_original>
